<compile_context>
chip_gen: v7x
topology: tpu7x:2x2x1
jax: 0.10.0
libtpu: 0.0.40
codegen_flags: <defaults>
</compile_context>

<pallas_src>
import jax
import jax.numpy as jnp
from jax.experimental import pallas as pl
from jax.experimental.pallas import tpu as pltpu


def _round_up(v, m):
    return (v + m - 1) // m * m


def _budgets():
    """(logits_block_byte_cap, vmem_limit_bytes), generation-aware."""
    try:
        vmem_cap = int(pltpu.get_tpu_info().vmem_capacity_bytes)
    except Exception:
        vmem_cap = 64 * 1024 * 1024                      # assume the smallest (v7x/TC)
    if vmem_cap >= 100 * 1024 * 1024:                    # v5e / v6e: 128 MiB VMEM
        return 4 * 1024 * 1024, 64 * 1024 * 1024
    return 3 * 1024 * 1024, 32 * 1024 * 1024             # v7x (64 MiB / TC) or unknown


def _pick_tile(S, P, C, itemsize, block_cap):
    """Lane-aligned spatial tile: logits block <= block_cap bytes."""
    per_chunk = _round_up(pl.cdiv(S, P), 128)
    ts = block_cap // max(C * itemsize, 1)
    # Bound TS so the (1, TS) target block stays small even after Mosaic pads
    # its single sublane up to a full (8/32, 128) tile in VMEM.
    ts = min(ts, 128 * 1024)
    ts = max(128, (ts // 128) * 128)
    return min(ts, per_chunk)


def _make_dice_kernel(S_true, TS, C, need_mask):
    def kernel(x_ref, t_ref, counts_ref, inter_acc, union_acc):
        # x_ref:      (1, C, TS) logits (native dtype)
        # t_ref:      (1, 1, TS) int8/int32 targets
        # counts_ref: (1, 1, C, 2) int32 -> [:, 0] = inter, [:, 1] = union
        # inter_acc / union_acc: (C, 1) int32 VMEM scratch (per sample+chunk)
        p = pl.program_id(1)
        s = pl.program_id(2)
        n_s = pl.num_programs(2)

        @pl.when(s == 0)
        def _():
            inter_acc[...] = jnp.zeros_like(inter_acc)
            union_acc[...] = jnp.zeros_like(union_acc)

        x = x_ref[0]                                          # (C, TS)
        t = t_ref[0].astype(jnp.int32)                        # (1, TS)

        cls = jax.lax.broadcasted_iota(jnp.int32, (C, TS), 0)

        # argmax over the class (sublane) axis with first-index tie breaking.
        maxv = jnp.max(x, axis=0, keepdims=True)              # (1, TS)
        cand = jnp.where(x == maxv, cls, jnp.int32(C))        # non-max -> C
        am = jnp.min(cand, axis=0, keepdims=True)             # (1, TS)

        if need_mask:
            # Fold the ragged-tail mask into the (1,TS)-level values: lanes
            # past S_true get class id C, which matches no class below.
            # NOTE: int32 position arithmetic (fine for S < 2^31 voxels).
            lane = jax.lax.broadcasted_iota(jnp.int32, (1, TS), 1)
            start = (p * n_s + s) * TS
            valid = (start + lane) < S_true                   # (1, TS)
            am = jnp.where(valid, am, jnp.int32(C))
            t = jnp.where(valid, t, jnp.int32(C))

        pred_hit = cls == am                                  # (C, TS) bool
        tgt_hit = cls == t                                    # (C, TS) bool
        w = pred_hit.astype(jnp.int32) + tgt_hit.astype(jnp.int32)   # 0/1/2

        union_acc[...] += jnp.sum(w, axis=1, keepdims=True)                   # (C,1)
        inter_acc[...] += jnp.sum(jnp.right_shift(w, 1), axis=1, keepdims=True)

        @pl.when(s == n_s - 1)
        def _():
            # Write raw counts in their natural (C, 2) layout; finalize (the
            # division, the factor 2 and the batch mean) happens in the wrapper.
            lane2 = jax.lax.broadcasted_iota(jnp.int32, (C, 2), 1)
            counts_ref[0, 0] = jnp.where(lane2 == 0, inter_acc[...], union_acc[...])

    return kernel


def dice(output, target, tile_s=None, num_spatial_chunks=None):
    """output: (N, C, *spatial) float; target: (N, 1, *spatial) int. Returns (C,) f32."""
    N, C = int(output.shape[0]), int(output.shape[1])
    S = 1
    for d in output.shape[2:]:
        S *= int(d)

    x = output.reshape(N, C, S)                            # keep native dtype
    tgt_dtype = jnp.int8 if C <= 127 else jnp.int32        # shrink target HBM traffic
    t = target.reshape(N, 1, S).astype(tgt_dtype)

    block_cap, vmem_limit = _budgets()

    # Megacore strategy: the batch axis is "parallel"; when N == 1 split the
    # spatial axis into 2 parallel chunks so a single big volume still uses
    # both TensorCores on v7x (partial counts are summed in the wrapper).
    if num_spatial_chunks is None:
        P = 2 if N == 1 else 1
    else:
        P = max(1, int(num_spatial_chunks))

    if tile_s is None:
        TS = _pick_tile(S, P, C, jnp.dtype(x.dtype).itemsize, block_cap)
    else:
        TS = max(128, _round_up(int(tile_s), 128))

    n_s = pl.cdiv(S, P * TS)
    S_pad = P * n_s * TS
    if S_pad != S:
        x = jnp.pad(x, ((0, 0), (0, 0), (0, S_pad - S)))
        t = jnp.pad(t, ((0, 0), (0, 0), (0, S_pad - S)))

    kernel = _make_dice_kernel(S, TS, C, need_mask=(S_pad != S))

    counts = pl.pallas_call(
        kernel,
        out_shape=jax.ShapeDtypeStruct((N, P, C, 2), jnp.int32),
        grid_spec=pltpu.PrefetchScalarGridSpec(
            num_scalar_prefetch=0,
            grid=(N, P, n_s),
            in_specs=[
                pl.BlockSpec((1, C, TS), lambda n, p, s: (n, 0, p * n_s + s)),
                pl.BlockSpec((1, 1, TS), lambda n, p, s: (n, 0, p * n_s + s)),
            ],
            out_specs=pl.BlockSpec((1, 1, C, 2), lambda n, p, s: (n, p, 0, 0)),
            scratch_shapes=[
                pltpu.VMEM((C, 1), jnp.int32),   # intersection accumulator
                pltpu.VMEM((C, 1), jnp.int32),   # union accumulator
            ],
        ),
        compiler_params=pltpu.CompilerParams(
            # batch + spatial-chunk axes are independent -> parallel (megacore);
            # the spatial-tile axis is a reduction into scratch -> arbitrary.
            dimension_semantics=("parallel", "parallel", "arbitrary"),
            vmem_limit_bytes=vmem_limit,
        ),
    )(x, t)

    counts = counts.astype(jnp.float32)          # exact: values are small ints
    inter = counts[..., 0].sum(axis=1)           # (N, C): combine spatial chunks
    union = counts[..., 1].sum(axis=1)           # (N, C)
    score = 2.0 * inter / (union + 1e-10)
    return jnp.mean(score, axis=0)               # (C,)


def _dice_ref(output, target):
    N, C = output.shape[0], output.shape[1]
    am = jnp.argmax(output, axis=1, keepdims=True)
    cls = jnp.arange(C).reshape(1, C, 1, 1)
    pred = (am == cls).astype(jnp.float32)
    tgt = (target == cls).astype(jnp.float32)
    red = tuple(range(2, output.ndim))
    inter = 2.0 * jnp.sum(pred * tgt, axis=red)
    union = jnp.sum(pred, axis=red) + jnp.sum(tgt, axis=red)
    return jnp.mean(inter / (union + 1e-10), axis=0)


if __name__ == "__main__":
    key = jax.random.PRNGKey(0)

    # Case 1: aligned shapes, multi-tile spatial axis, f32 logits.
    k1, k2, key = jax.random.split(key, 3)
    N, C, H, W = 2, 4, 16, 16
    output = jax.random.normal(k1, (N, C, H, W), dtype=jnp.float32)
    target = jax.random.randint(k2, (N, 1, H, W), 0, C, dtype=jnp.int32)
    score = dice(output, target, tile_s=128)          # 2 spatial tiles
    jax.block_until_ready(score)
    ref = _dice_ref(output, target)
    assert score.shape == (C,)
    assert jnp.allclose(score, ref, atol=1e-5), (score, ref)

    # Case 2: ragged spatial size (exercises (1,TS)-level tail masking), odd C.
    k1, k2, key = jax.random.split(key, 3)
    N, C, H, W = 3, 5, 10, 13
    output = jax.random.normal(k1, (N, C, H, W), dtype=jnp.float32)
    target = jax.random.randint(k2, (N, 1, H, W), 0, C, dtype=jnp.int32)
    score = dice(output, target, tile_s=128)          # 2 tiles, partial tail
    jax.block_until_ready(score)
    ref = _dice_ref(output, target)
    assert score.shape == (C,)
    assert jnp.allclose(score, ref, atol=1e-5), (score, ref)

    # Case 3: N == 1 -> spatial axis split across 2 parallel chunks (v7x
    # megacore path) + ragged tail + bf16 logits + int8 targets.
    k1, k2, key = jax.random.split(key, 3)
    N, C, H, W = 1, 4, 16, 17
    output = jax.random.normal(k1, (N, C, H, W), dtype=jnp.bfloat16)
    target = jax.random.randint(k2, (N, 1, H, W), 0, C, dtype=jnp.int32)
    score = dice(output, target, tile_s=128)
    jax.block_until_ready(score)
    ref = _dice_ref(output, target)
    assert score.shape == (C,)
    assert jnp.allclose(score, ref, atol=1e-5), (score, ref)

    print("KERNEL_OK")
</pallas_src>

<mosaic_0001>
module attributes {stable_mosaic.version = 11 : i64} {
  func.func @kernel(%arg0: i32, %arg1: i32, %arg2: i32, %arg3: memref<1x4x128xf32, #tpu.memory_space<vmem>>, %arg4: memref<1x1x128xi8, #tpu.memory_space<vmem>>, %arg5: memref<1x1x4x2xi32, #tpu.memory_space<vmem>>, %arg6: memref<4x1xi32, #tpu.memory_space<vmem>>, %arg7: memref<4x1xi32, #tpu.memory_space<vmem>>) attributes {dimension_semantics = [#tpu.dimension_semantics<parallel>, #tpu.dimension_semantics<parallel>, #tpu.dimension_semantics<arbitrary>], iteration_bounds = array<i64: 2, 1, 2>, scalar_prefetch = 0 : i64, scratch_operands = 2 : i64, tpu.core_type = #tpu.core_type<tc>, window_params = [{transform_indices = @transform_0, window_bounds = array<i64: 1, 4, 128>}, {transform_indices = @transform_1, window_bounds = array<i64: 1, 1, 128>}, {transform_indices = @transform_2, window_bounds = array<i64: 1, 1, 4, 2>}]} {
    %c0_i32 = arith.constant 0 : i32
    %0 = arith.cmpi eq, %arg2, %c0_i32 : i32
    %1 = arith.extui %0 : i1 to i32
    %c0_i32_0 = arith.constant 0 : i32
    %2 = arith.cmpi ne, %1, %c0_i32_0 : i32
    scf.if %2 {
      %c0_i32_19 = arith.constant 0 : i32
      %39 = vector.broadcast %c0_i32_19 : i32 to vector<4x1xi32>
      %c0_20 = arith.constant 0 : index
      %c0_21 = arith.constant 0 : index
      %40 = vector.load %arg6[%c0_20, %c0_21] : memref<4x1xi32, #tpu.memory_space<vmem>>, vector<4x1xi32>
      tpu.vector_store %arg6[%c0_20, %c0_21], %39 {strides = array<i32>} : memref<4x1xi32, #tpu.memory_space<vmem>>, vector<4x1xi32>,
      %c0_i32_22 = arith.constant 0 : i32
      %41 = vector.broadcast %c0_i32_22 : i32 to vector<4x1xi32>
      %c0_23 = arith.constant 0 : index
      %c0_24 = arith.constant 0 : index
      %42 = vector.load %arg7[%c0_23, %c0_24] : memref<4x1xi32, #tpu.memory_space<vmem>>, vector<4x1xi32>
      tpu.vector_store %arg7[%c0_23, %c0_24], %41 {strides = array<i32>} : memref<4x1xi32, #tpu.memory_space<vmem>>, vector<4x1xi32>,
    } else {
    }
    %c0 = arith.constant 0 : index
    %c0_1 = arith.constant 0 : index
    %c0_2 = arith.constant 0 : index
    %3 = vector.load %arg3[%c0, %c0_1, %c0_2] : memref<1x4x128xf32, #tpu.memory_space<vmem>>, vector<1x4x128xf32>
    %4 = vector.shape_cast %3 : vector<1x4x128xf32> to vector<4x128xf32>
    %c0_3 = arith.constant 0 : index
    %c0_4 = arith.constant 0 : index
    %c0_5 = arith.constant 0 : index
    %5 = vector.load %arg4[%c0_3, %c0_4, %c0_5] : memref<1x1x128xi8, #tpu.memory_space<vmem>>, vector<1x1x128xi8>
    %6 = vector.shape_cast %5 : vector<1x1x128xi8> to vector<1x128xi8>
    %7 = arith.extsi %6 : vector<1x128xi8> to vector<1x128xi32>
    %8 = tpu.iota {dimensions = array<i32: 0>} : vector<4x128xi32>
    %cst = arith.constant dense<0xFF800000> : vector<128xf32>
    %9 = vector.multi_reduction <maximumf>, %4, %cst [0] : vector<4x128xf32> to vector<128xf32>
    %10 = vector.shape_cast %9 : vector<128xf32> to vector<1x128xf32>
    %11 = vector.broadcast %10 : vector<1x128xf32> to vector<4x128xf32>
    %12 = arith.cmpf oeq, %4, %11 : vector<4x128xf32>
    %c4_i32 = arith.constant 4 : i32
    %13 = vector.broadcast %c4_i32 : i32 to vector<4x128xi32>
    %14 = arith.select %12, %8, %13 : vector<4x128xi1>, vector<4x128xi32>
    %cst_6 = arith.constant dense<2147483647> : vector<128xi32>
    %15 = vector.multi_reduction <minsi>, %14, %cst_6 [0] : vector<4x128xi32> to vector<128xi32>
    %16 = vector.shape_cast %15 : vector<128xi32> to vector<1x128xi32>
    %17 = vector.broadcast %16 : vector<1x128xi32> to vector<4x128xi32>
    %18 = arith.cmpi eq, %8, %17 : vector<4x128xi32>
    %19 = vector.broadcast %7 : vector<1x128xi32> to vector<4x128xi32>
    %20 = arith.cmpi eq, %8, %19 : vector<4x128xi32>
    %21 = arith.extui %18 : vector<4x128xi1> to vector<4x128xi32>
    %22 = arith.extui %20 : vector<4x128xi1> to vector<4x128xi32>
    %23 = arith.addi %21, %22 : vector<4x128xi32>
    %c0_7 = arith.constant 0 : index
    %c0_8 = arith.constant 0 : index
    %24 = vector.load %arg7[%c0_7, %c0_8] : memref<4x1xi32, #tpu.memory_space<vmem>>, vector<4x1xi32>
    %cst_9 = arith.constant dense<0> : vector<4xi32>
    %25 = vector.multi_reduction <add>, %23, %cst_9 [1] : vector<4x128xi32> to vector<4xi32>
    %26 = vector.shape_cast %25 : vector<4xi32> to vector<4x1xi32>
    %27 = arith.addi %24, %26 : vector<4x1xi32>
    %c0_10 = arith.constant 0 : index
    %c0_11 = arith.constant 0 : index
    %28 = vector.load %arg7[%c0_10, %c0_11] : memref<4x1xi32, #tpu.memory_space<vmem>>, vector<4x1xi32>
    tpu.vector_store %arg7[%c0_10, %c0_11], %27 {strides = array<i32>} : memref<4x1xi32, #tpu.memory_space<vmem>>, vector<4x1xi32>,
    %c0_12 = arith.constant 0 : index
    %c0_13 = arith.constant 0 : index
    %29 = vector.load %arg6[%c0_12, %c0_13] : memref<4x1xi32, #tpu.memory_space<vmem>>, vector<4x1xi32>
    %c1_i32 = arith.constant 1 : i32
    %30 = vector.broadcast %c1_i32 : i32 to vector<4x128xi32>
    %31 = arith.shrsi %23, %30 : vector<4x128xi32>
    %cst_14 = arith.constant dense<0> : vector<4xi32>
    %32 = vector.multi_reduction <add>, %31, %cst_14 [1] : vector<4x128xi32> to vector<4xi32>
    %33 = vector.shape_cast %32 : vector<4xi32> to vector<4x1xi32>
    %34 = arith.addi %29, %33 : vector<4x1xi32>
    %c0_15 = arith.constant 0 : index
    %c0_16 = arith.constant 0 : index
    %35 = vector.load %arg6[%c0_15, %c0_16] : memref<4x1xi32, #tpu.memory_space<vmem>>, vector<4x1xi32>
    tpu.vector_store %arg6[%c0_15, %c0_16], %34 {strides = array<i32>} : memref<4x1xi32, #tpu.memory_space<vmem>>, vector<4x1xi32>,
    %c1_i32_17 = arith.constant 1 : i32
    %36 = arith.cmpi eq, %arg2, %c1_i32_17 : i32
    %37 = arith.extui %36 : i1 to i32
    %c0_i32_18 = arith.constant 0 : i32
    %38 = arith.cmpi ne, %37, %c0_i32_18 : i32
    scf.if %38 {
      %39 = tpu.iota {dimensions = array<i32: 1>} : vector<4x2xi32>
      %c0_i32_19 = arith.constant 0 : i32
      %40 = vector.broadcast %c0_i32_19 : i32 to vector<4x2xi32>
      %41 = arith.cmpi eq, %39, %40 : vector<4x2xi32>
      %c0_20 = arith.constant 0 : index
      %c0_21 = arith.constant 0 : index
      %42 = vector.load %arg6[%c0_20, %c0_21] : memref<4x1xi32, #tpu.memory_space<vmem>>, vector<4x1xi32>
      %c0_22 = arith.constant 0 : index
      %c0_23 = arith.constant 0 : index
      %43 = vector.load %arg7[%c0_22, %c0_23] : memref<4x1xi32, #tpu.memory_space<vmem>>, vector<4x1xi32>
      %44 = vector.shape_cast %42 : vector<4x1xi32> to vector<4x1xi32>
      %45 = vector.broadcast %44 : vector<4x1xi32> to vector<4x2xi32>
      %46 = vector.shape_cast %43 : vector<4x1xi32> to vector<4x1xi32>
      %47 = vector.broadcast %46 : vector<4x1xi32> to vector<4x2xi32>
      %48 = arith.select %41, %45, %47 : vector<4x2xi1>, vector<4x2xi32>
      %c0_24 = arith.constant 0 : index
      %c0_25 = arith.constant 0 : index
      %c0_26 = arith.constant 0 : index
      %c0_27 = arith.constant 0 : index
      %49 = vector.load %arg5[%c0_24, %c0_25, %c0_26, %c0_27] : memref<1x1x4x2xi32, #tpu.memory_space<vmem>>, vector<1x1x4x2xi32>
      %50 = vector.shape_cast %49 : vector<1x1x4x2xi32> to vector<4x2xi32>
      %51 = vector.shape_cast %48 : vector<4x2xi32> to vector<1x1x4x2xi32>
      tpu.vector_store %arg5[%c0_24, %c0_25, %c0_26, %c0_27], %51 {strides = array<i32>} : memref<1x1x4x2xi32, #tpu.memory_space<vmem>>, vector<1x1x4x2xi32>,
    } else {
    }
    return
  }
  func.func @transform_0(%arg0: i32, %arg1: i32, %arg2: i32) -> (i32, i32, i32) {
    %c2_i32 = arith.constant 2 : i32
    %0 = arith.muli %arg1, %c2_i32 : i32
    %1 = arith.addi %0, %arg2 : i32
    %c0_i32 = arith.constant 0 : i32
    %c0_i32_0 = arith.constant 0 : i32
    return %arg0, %c0_i32, %1 : i32, i32, i32
  }
  func.func @transform_1(%arg0: i32, %arg1: i32, %arg2: i32) -> (i32, i32, i32) {
    %c2_i32 = arith.constant 2 : i32
    %0 = arith.muli %arg1, %c2_i32 : i32
    %1 = arith.addi %0, %arg2 : i32
    %c0_i32 = arith.constant 0 : i32
    %c0_i32_0 = arith.constant 0 : i32
    return %arg0, %c0_i32, %1 : i32, i32, i32
  }
  func.func @transform_2(%arg0: i32, %arg1: i32, %arg2: i32) -> (i32, i32, i32, i32) {
    %c0_i32 = arith.constant 0 : i32
    %c0_i32_0 = arith.constant 0 : i32
    %c0_i32_1 = arith.constant 0 : i32
    return %arg0, %arg1, %c0_i32, %c0_i32_0 : i32, i32, i32, i32
  }
}

</mosaic_0001>

<llo_original>
// kernel: tpu_custom_call.1
$region0: #{tpu_custom_call.1}
  #allocation0 [shape = 'u32[]', space=smem, size = 0x4, offset = 0x4, fixed_abs, tag = 'smem constant byte address 0x4 - core index']
  #allocation1 [shape = 'u32[144,128]{1,0:T(1,128)}', space=vmem, size = 0x12000, scoped, tag = 'internal scratch']
  #allocation2 [shape = 's32[4,1]{1,0:T(4,128)}', space=vmem, size = 0x800, scoped, tag = 'scratch operand']
  #allocation3 [shape = 's32[4,1]{1,0:T(4,128)}', space=vmem, size = 0x800, scoped, tag = 'scratch operand']
  %s0 = inlined_call_operand.hbm [shape: f32[2,4,256], index: 0, kind: input, shape index: {}]
  %s1 = inlined_call_operand.vmem [shape: s8[2,1,256], index: 1, kind: input, shape index: {}]
  %s2 = inlined_call_operand.vmem [shape: s32[2,1,4,2], index: 2, kind: output, shape index: {}]
  %s3 = sld [smem:[#allocation0]]
  $region53: #{tpu_custom_call.1} parent=0
    _
  %s5 = ssub.s32 1, %s3
  %s6 = scalar_select 0, %s5, %s3
  $region1: #{tpu_custom_call.1} parent=0
    #allocation4 [shape = 'u8[4096]{0}', space=vmem, size = 0x1000, scoped, tag = 'input window, operand 0']
    #allocation5 [shape = 's32[2]{0}', space=sflag, size = 0x8, scoped, tag = 'scoped memory for tpu_custom_call.1']
    %7 = vsyncpa [#allocation5], 0
    %s8 = scalar_lea.sflag [#allocation5], 1
    %9 = vsyncpa %s8, 0
    loop: start=0, step=1, limit=6
    $region2: #{tpu_custom_call.1} parent=1 // loop_pre_header
      _
    $region3: #{tpu_custom_call.1} parent=1 // loop_header
      %s11 = sphi 0, %s15
      %p12 = scmp.ge.s32.totalorder %s11, 6
      %s18 = sphi 0, %s37
      %s19 = sphi 0, %s33
      %s20 = sphi 0, %s29
      %s21 = sphi 0, %s18
      %s22 = sphi 0, %s19
      %s23 = sphi 0, %s20
      %s24 = sphi 0, %s21
      %s25 = sphi 0, %s22
      %s26 = sphi 0, %s23
      %s46 = sphi 0, %s48
      %s49 = sphi 0, %s46
      %s50 = sphi 0, %s49
      %s66 = sphi 0, %s50
      %s78 = sphi 0, %s80
      %s81 = sphi 0, %s78
      %s82 = sphi 0, %s81
      %s98 = sphi 0, %s82
      %s106 = sphi 0, %s108
      %s109 = sphi 0, %s106
      %s110 = sphi 0, %s109
      %s126 = sphi 0, %s110
    $region4: #{tpu_custom_call.1} parent=1 // loop_header_branch
      %14 = sbr.rel (%p12) target = $region8
    $region5: #{tpu_custom_call.1} parent=1 // loop_body
      %s16 = ssub.s32 %s11, 1
      %s17 = ssub.s32 %s11, 2
      %s27 = sadd.s32 1, %s20
      %p28 = scmp.ge.s32.totalorder %s27, 2
      %s29 = scalar_select %p28, 0, %s27
      %s30 = sadd.s32 1, %s19
      %s31 = scalar_select %p28, %s30, %s19
      %p32 = scmp.ge.s32.totalorder %s31, 1
      %s33 = scalar_select %p32, 0, %s31
      %s34 = sadd.s32 1, %s18
      %s35 = scalar_select %p32, %s34, %s18
      %p36 = scmp.ge.s32.totalorder %s35, 2
      %s37 = scalar_select %p36, 0, %s35
      %s38 = smul.u32 %s19, 2
      %s39 = sadd.s32 %s38, %s20
      %s40 = smul.u32 %s33, 2
      %s41 = sadd.s32 %s40, %s29
      %s42 = ssub.s32 %s18, %s37
      %s43 = ssub.s32 %s39, %s41
      %s44 = sor.u32 %s42, %s43
      %p45 = scmp.eq.s32.totalorder %s44, 0
      %s47 = sadd.s32 %s46, 1
      %s48 = scalar_select %p45, %s46, %s47
      %p51 = pneg %p45
      %p52 = scmp.eq.s32.totalorder %s11, 3
      %p53 = por %p51, %p52
      %p54 = scmp.ne.s32.totalorder %s46, %s49
      %p55 = scmp.eq.s32.totalorder %s11, 0
      %p56 = por %p54, %p55
      %p57 = scmp.ne.s32.totalorder %s46, %s49
      %p58 = scmp.eq.s32.totalorder %s16, 3
      %p59 = por %p57, %p58
      %p60 = scmp.ne.s32.totalorder %s49, %s50
      %p61 = scmp.eq.s32.totalorder %s16, 0
      %p62 = por %p60, %p61
      %p63 = scmp.ne.s32.totalorder %s49, %s50
      %p64 = scmp.eq.s32.totalorder %s17, 3
      %p65 = por %p63, %p64
      %p67 = scmp.ne.s32.totalorder %s50, %s66
      %p68 = scmp.eq.s32.totalorder %s17, 0
      %p69 = por %p67, %p68
      %s70 = smul.u32 %s19, 2
      %s71 = sadd.s32 %s70, %s20
      %s72 = smul.u32 %s33, 2
      %s73 = sadd.s32 %s72, %s29
      %s74 = ssub.s32 %s18, %s37
      %s75 = ssub.s32 %s71, %s73
      %s76 = sor.u32 %s74, %s75
      %p77 = scmp.eq.s32.totalorder %s76, 0
      %s79 = sadd.s32 %s78, 1
      %s80 = scalar_select %p77, %s78, %s79
      %p83 = pneg %p77
      %p84 = scmp.eq.s32.totalorder %s11, 3
      %p85 = por %p83, %p84
      %p86 = scmp.ne.s32.totalorder %s78, %s81
      %p87 = scmp.eq.s32.totalorder %s11, 0
      %p88 = por %p86, %p87
      %p89 = scmp.ne.s32.totalorder %s78, %s81
      %p90 = scmp.eq.s32.totalorder %s16, 3
      %p91 = por %p89, %p90
      %p92 = scmp.ne.s32.totalorder %s81, %s82
      %p93 = scmp.eq.s32.totalorder %s16, 0
      %p94 = por %p92, %p93
      %p95 = scmp.ne.s32.totalorder %s81, %s82
      %p96 = scmp.eq.s32.totalorder %s17, 3
      %p97 = por %p95, %p96
      %p99 = scmp.ne.s32.totalorder %s82, %s98
      %p100 = scmp.eq.s32.totalorder %s17, 0
      %p101 = por %p99, %p100
      %s102 = ssub.s32 %s18, %s37
      %s103 = ssub.s32 %s19, %s33
      %s104 = sor.u32 %s102, %s103
      %p105 = scmp.eq.s32.totalorder %s104, 0
      %s107 = sadd.s32 %s106, 1
      %s108 = scalar_select %p105, %s106, %s107
      %p111 = pneg %p105
      %p112 = scmp.eq.s32.totalorder %s11, 3
      %p113 = por %p111, %p112
      %p114 = scmp.ne.s32.totalorder %s106, %s109
      %p115 = scmp.eq.s32.totalorder %s11, 0
      %p116 = por %p114, %p115
      %p117 = scmp.ne.s32.totalorder %s106, %s109
      %p118 = scmp.eq.s32.totalorder %s16, 3
      %p119 = por %p117, %p118
      %p120 = scmp.ne.s32.totalorder %s109, %s110
      %p121 = scmp.eq.s32.totalorder %s16, 0
      %p122 = por %p120, %p121
      %p123 = scmp.ne.s32.totalorder %s109, %s110
      %p124 = scmp.eq.s32.totalorder %s17, 3
      %p125 = por %p123, %p124
      %p127 = scmp.ne.s32.totalorder %s110, %s126
      %p128 = scmp.eq.s32.totalorder %s17, 0
      %p129 = por %p127, %p128
      %p130 = scmp.le.s32.totalorder 1, %s11
      %p131 = scmp.lt.s32.totalorder %s11, 5
      %p132 = pnand %p130, %p131
      %p133 = pneg %p132
      // Predicated region
      $region9: #{tpu_custom_call.1} parent=5 // pred_check
        _
      $region10: #{tpu_custom_call.1} parent=5 // pred_check_branch
        %135 = sbr.rel (%p132) target = $region12
      $region11: #{tpu_custom_call.1} parent=5 // pred_region
        %s136 = ssub.s32 %s11, 1
      $region12: #{tpu_custom_call.1} parent=5 // pred_fallthru
        _
      %p137 = scmp.lt.s32.totalorder %s11, 4
      // Predicated region
      $region13: #{tpu_custom_call.1} parent=5 // pred_check
        %p138 = pneg %p137
      $region14: #{tpu_custom_call.1} parent=5 // pred_check_branch
        %140 = sbr.rel (%p138) target = $region16
      $region15: #{tpu_custom_call.1} parent=5 // pred_region
        // Predicated region
        $region17: #{tpu_custom_call.1} parent=15 // pred_check
          %p141 = pneg %p56
        $region18: #{tpu_custom_call.1} parent=15 // pred_check_branch
          %143 = sbr.rel (%p141) target = $region20
        $region19: #{tpu_custom_call.1} parent=15 // pred_region
          %s144 = sand.u32 %s46, 1
          %s145 = scalar_lea.sflag [#allocation5], %s144
          %s146 = sand.u32 %s46, 1
          %s147 = smul.addr %s146, 4
          %s148 = scalar_lea.vmem [#allocation4], %s147
          %s149 = smul.u32 %s19, 2
          %s150 = sadd.s32 %s149, %s20
          %s152 = ssub.s32 64, 64
          %153 = vsyncadd %s145, %s152
          %s154 = smul.addr %s18, 2
          %s155 = sadd.s32 %s150, %s154
          %s156 = smul.addr %s155, 64
          %s157 = scalar_lea.hbm %s0, %s156
          %s159 = sshll.u32 %s148, 4
          %s160 = int_to_ptr.vmem [resolvable:$true] %s159
          %162 = dma.hbm_to_vmem [thread:$0]  %s157, 64, %s160, %s145
        $region20: #{tpu_custom_call.1} parent=15 // pred_fallthru
          _
        // Predicated region
        $region21: #{tpu_custom_call.1} parent=15 // pred_check
          %p163 = pneg %p88
        $region22: #{tpu_custom_call.1} parent=15 // pred_check_branch
          %165 = sbr.rel (%p163) target = $region24
        $region23: #{tpu_custom_call.1} parent=15 // pred_region
          %s166 = smul.u32 %s19, 2
          %s167 = sadd.s32 %s166, %s20
          %p168 = scmp.lt.s32.totalorder %s18, 1
          %s169 = scalar_select %p168, %s18, 1
          %p170 = scmp.lt.s32.totalorder %s167, 1
          %s171 = scalar_select %p170, %s167, 1
          %s172 = smul.addr %s169, 2
          %s173 = sadd.s32 %s171, %s172
          %s174 = scalar_lea.vmem %s1, %s173
          %s175 = smul.u32 %s19, 2
          %s176 = sadd.s32 %s175, %s20
        $region24: #{tpu_custom_call.1} parent=15 // pred_fallthru
          _
      $region16: #{tpu_custom_call.1} parent=5 // pred_fallthru
        _
      %p177 = scmp.le.s32.totalorder 1, %s11
      %p178 = scmp.lt.s32.totalorder %s11, 5
      %p179 = pnand %p177, %p178
      %p180 = pneg %p179
      // Predicated region
      $region25: #{tpu_custom_call.1} parent=5 // pred_check
        _
      $region26: #{tpu_custom_call.1} parent=5 // pred_check_branch
        %182 = sbr.rel (%p179) target = $region28
      $region27: #{tpu_custom_call.1} parent=5 // pred_region
        %s183 = ssub.s32 %s11, 1
        %s184 = sand.u32 %s49, 1
        %s185 = scalar_lea.sflag [#allocation5], %s184
        %s186 = sand.u32 %s49, 1
        %s187 = smul.addr %s186, 4
        %s188 = scalar_lea.vmem [#allocation4], %s187
        // Predicated region
        $region29: #{tpu_custom_call.1} parent=27 // pred_check
          %p189 = pneg %p62
        $region30: #{tpu_custom_call.1} parent=27 // pred_check_branch
          %191 = sbr.rel (%p189) target = $region32
        $region31: #{tpu_custom_call.1} parent=27 // pred_region
          %192 = dma.done %s185, 64
        $region32: #{tpu_custom_call.1} parent=27 // pred_fallthru
          _
        %s193 = sand.u32 %s49, 1
        %s194 = scalar_lea.sflag [#allocation5], %s193
        %s195 = sand.u32 %s49, 1
        %s196 = smul.addr %s195, 4
        %s197 = scalar_lea.vmem [#allocation4], %s196
        %p198 = pneg %p62
        %p199 = pneg %p59
        %s200 = smul.u32 %s22, 2
        %s201 = sadd.s32 %s200, %s23
        %p202 = scmp.lt.s32.totalorder %s21, 1
        %s203 = scalar_select %p202, %s21, 1
        %p204 = scmp.lt.s32.totalorder %s201, 1
        %s205 = scalar_select %p204, %s201, 1
        %s206 = smul.addr %s203, 2
        %s207 = sadd.s32 %s205, %s206
        %s208 = scalar_lea.vmem %s1, %s207
        %p209 = pneg %p94
        %p210 = pneg %p91
        %p211 = pneg %p122
        %p212 = pneg %p119
        %p213 = scmp.lt.s32.totalorder %s21, 1
        %s214 = scalar_select %p213, %s21, 1
        %p215 = scmp.lt.s32.totalorder %s22, 0
        %s216 = scalar_select %p215, %s22, 0
        %s217 = sadd.s32 %s216, %s214
        %s218 = smul.addr %s217, 4
        %s219 = scalar_lea.vmem %s2, %s218
        %s220 = smul.u32 %s22, 2
        %s221 = sadd.s32 %s220, %s23
        %s222 = smul.u32 %s22, 2
        %s223 = sadd.s32 %s222, %s23
        %p224 = scmp.lt.s32.totalorder %s21, 1
        %s225 = scalar_select %p224, %s21, 1
        %p226 = scmp.lt.s32.totalorder %s223, 1
        %s227 = scalar_select %p226, %s223, 1
        %s228 = smul.addr %s225, 2
        %s229 = sadd.s32 %s227, %s228
        %s230 = scalar_lea.vmem %s1, %s229
        %s231 = smul.u32 %s22, 2
        %s232 = sadd.s32 %s231, %s23
        %p233 = scmp.lt.s32.totalorder %s21, 1
        %s234 = scalar_select %p233, %s21, 1
        %p235 = scmp.lt.s32.totalorder %s22, 0
        %s236 = scalar_select %p235, %s22, 0
        %s237 = sadd.s32 %s236, %s234
        %s238 = smul.addr %s237, 4
        %s239 = scalar_lea.vmem %s2, %s238
        %p240 = scmp.eq.s32.totalorder %s23, 0
        // Predicated region
        $region33: #{tpu_custom_call.1} parent=27 // pred_check
          %p241 = pneg %p240
        $region34: #{tpu_custom_call.1} parent=27 // pred_check_branch
          %243 = sbr.rel (%p241) target = $region36
        $region35: #{tpu_custom_call.1} parent=27 // pred_region
          %vm244 = vcmask 3072
          %245 = vst.msk [vmem:[#allocation2] sm:$0xf] %vm244, 0
          %246 = vst.msk [vmem:[#allocation3] sm:$0xf] %vm244, 0
        $region36: #{tpu_custom_call.1} parent=27 // pred_fallthru
          _
        %v247 = vld [vmem:[%s188] sm:$0xf]
        %v248 = vld [vmem:[%s230] sm:$0x1]
        %v249 = vunpack.c.0.s8 %v248
        %v250 = vlaneseq
        %v251 = vshrl.u32 %v250, 7
        %vm252 = vcmask 1043456
        %v253 = vsel %vm252, %v247, -inf
        %v254 = vrot.slane %v253, 4
        %v255 = vmax.f32 %v253, %v254
        %v256 = vrot.slane %v255, 2
        %v257 = vmax.f32 %v255, %v256
        %v258 = vrot.slane %v257, 1
        %v259 = vmax.f32 %v257, %v258
        %vm260 = vcmp.eq.f32.partialorder %v247, %v259
        %v261 = vsel %vm260, %v251, 4
        %v262 = vsel %vm252, %v261, 2147483647
        %v263 = vrot.slane %v262, 4
        %vm264 = vcmp.lt.s32.totalorder %v262, %v263
        %v265 = vsel %vm264, %v262, %v263
        %v266 = vrot.slane %v265, 2
        %vm267 = vcmp.lt.s32.totalorder %v265, %v266
        %v268 = vsel %vm267, %v265, %v266
        %v269 = vrot.slane %v268, 1
        %vm270 = vcmp.lt.s32.totalorder %v268, %v269
        %v271 = vsel %vm270, %v268, %v269
        %vm272 = vcmp.eq.s32.totalorder %v251, %v271
        %v273 = vlaneseq
        %v274 = vshrl.u32 %v273, 7
        %v275 = vsub.s32 0, %v274
        %v276 = vrot.slane %v249, %v275
        %vm277 = vcmp.eq.s32.totalorder %v251, %v276
        %v278 = vsel %vm272, 1, 0
        %v279 = vsel %vm277, 1, 0
        %v280 = vadd.s32 %v278, %v279
        %v281 = vld [vmem:[#allocation3] sm:$0xf]
        %v282 = vsel %vm252, %v280, 0
        %v283 = vand.u32 %v282, 65535
        %v284 = vshrl.u32 %v282, 16
        %v285 = vcvt.s32.f32 %v283
        %v286 = vcvt.s32.f32 %v284
        %287 = vadd.xlane.f32.xlu0 %v285
        %v288 = vpop.xlane.xlu0 %287
        %289 = vadd.xlane.f32.xlu0 %v286
        %v290 = vpop.xlane.xlu0 %289
        %v291 = vcvt.f32.s32 %v288
        %v292 = vcvt.f32.s32 %v290
        %v293 = vshll.u32 %v292, 16
        %v294 = vadd.s32 %v293, %v291
        %v295 = vadd.s32 %v281, %v294
        %vm296 = vcmask 3072
        %297 = vst.msk [vmem:[#allocation3] sm:$0xf] %vm296, %v295
        %v298 = vld [vmem:[#allocation2] sm:$0xf]
        %v299 = vshra.s32 %v280, 1
        %v300 = vsel %vm252, %v299, 0
        %v301 = vand.u32 %v300, 65535
        %v302 = vshrl.u32 %v300, 16
        %v303 = vcvt.s32.f32 %v301
        %v304 = vcvt.s32.f32 %v302
        %305 = vadd.xlane.f32.xlu0 %v303
        %v306 = vpop.xlane.xlu0 %305
        %307 = vadd.xlane.f32.xlu0 %v304
        %v308 = vpop.xlane.xlu0 %307
        %v309 = vcvt.f32.s32 %v306
        %v310 = vcvt.f32.s32 %v308
        %v311 = vshll.u32 %v310, 16
        %v312 = vadd.s32 %v311, %v309
        %v313 = vadd.s32 %v298, %v312
        %314 = vst.msk [vmem:[#allocation2] sm:$0xf] %vm296, %v313
        %p315 = scmp.eq.s32.totalorder %s23, 1
        // Predicated region
        $region37: #{tpu_custom_call.1} parent=27 // pred_check
          %p316 = pneg %p315
        $region38: #{tpu_custom_call.1} parent=27 // pred_check_branch
          %318 = sbr.rel (%p316) target = $region40
        $region39: #{tpu_custom_call.1} parent=27 // pred_region
          %v319 = vlaneseq
          %v320 = vand.u32 %v319, 127
          %vm321 = vcmp.eq.s32.totalorder %v320, 0
          %v322 = vld [vmem:[#allocation2] sm:$0xf]
          %v323 = vld [vmem:[#allocation3] sm:$0xf]
          %324 = vset.pattern.permute.xlu0 0
          %325 = vperm.xlu0 %324, %v322
          %v326 = vpop.permute.xlu0 %325
          %327 = vset.pattern.permute.xlu0 0
          %328 = vperm.xlu0 %327, %v323
          %v329 = vpop.permute.xlu0 %328
          %v330 = vsel %vm321, %v326, %v329
          %vm331 = vcmask 11264
          %332 = vst.msk [vmem:[%s239] sm:$0xf] %vm331, %v330
        $region40: #{tpu_custom_call.1} parent=27 // pred_fallthru
          _
        %p333 = scmp.lt.s32.totalorder %s21, 1
        %s334 = scalar_select %p333, %s21, 1
        %p335 = scmp.lt.s32.totalorder %s22, 0
        %s336 = scalar_select %p335, %s22, 0
        %s337 = sadd.s32 %s336, %s334
        %s338 = smul.addr %s337, 4
        %s339 = scalar_lea.vmem %s2, %s338
        // Predicated region
        $region41: #{tpu_custom_call.1} parent=27 // pred_check
          %p340 = pneg %p119
        $region42: #{tpu_custom_call.1} parent=27 // pred_check_branch
          %342 = sbr.rel (%p340) target = $region44
        $region43: #{tpu_custom_call.1} parent=27 // pred_region
          _
        $region44: #{tpu_custom_call.1} parent=27 // pred_fallthru
          _
      $region28: #{tpu_custom_call.1} parent=5 // pred_fallthru
        _
      %p343 = scmp.le.s32.totalorder 2, %s11
      // Predicated region
      $region45: #{tpu_custom_call.1} parent=5 // pred_check
        %p344 = pneg %p343
      $region46: #{tpu_custom_call.1} parent=5 // pred_check_branch
        %346 = sbr.rel (%p344) target = $region48
      $region47: #{tpu_custom_call.1} parent=5 // pred_region
        %s347 = ssub.s32 %s11, 2
        // Predicated region
        $region49: #{tpu_custom_call.1} parent=47 // pred_check
          %p348 = pneg %p125
        $region50: #{tpu_custom_call.1} parent=47 // pred_check_branch
          %350 = sbr.rel (%p348) target = $region52
        $region51: #{tpu_custom_call.1} parent=47 // pred_region
          %p351 = scmp.lt.s32.totalorder %s24, 1
          %s352 = scalar_select %p351, %s24, 1
          %p353 = scmp.lt.s32.totalorder %s25, 0
          %s354 = scalar_select %p353, %s25, 0
          %s355 = sadd.s32 %s354, %s352
          %s356 = smul.addr %s355, 4
          %s357 = scalar_lea.vmem %s2, %s356
        $region52: #{tpu_custom_call.1} parent=47 // pred_fallthru
          _
      $region48: #{tpu_custom_call.1} parent=5 // pred_fallthru
        _
    $region6: #{tpu_custom_call.1} parent=1 // loop_footer
      %s15 = sadd.s32 1, %s11
    $region7: #{tpu_custom_call.1} parent=1 // loop_footer_branch
      %10 = sbr.rel target = $region3
    $region8: #{tpu_custom_call.1} parent=1 // loop_exit
      _
    %358 = vsyncpa [#allocation5], 1
    %s359 = scalar_lea.sflag [#allocation5], 1
    %360 = vsyncpa %s359, 1

</llo_original>
